<compile_context>
chip_gen: v6e
topology: v6e:2x2x1
jax: 0.10.0
libtpu: 0.0.40
codegen_flags: <defaults>
</compile_context>

<pallas_src>
import functools

import jax
import jax.numpy as jnp
from jax.experimental import pallas as pl
from jax.experimental.pallas import tpu as pltpu

LN_EPS = 1e-5  # torch.nn.LayerNorm default
LANE = 128
SUBLANE = 8


def _round_up(v, m):
    return ((v + m - 1) // m) * m


def _cdiv(a, b):
    return -(-a // b)


def _pad2(a, rows, cols, dtype=None):
    if dtype is not None:
        a = a.astype(dtype)
    return jnp.pad(a, ((0, rows - a.shape[0]), (0, cols - a.shape[1])))


def _vmem_capacity_bytes():
    """Per-core VMEM capacity; conservative fallback if the query fails."""
    try:
        cap = getattr(pltpu.get_tpu_info(), "vmem_capacity_bytes", None)
        if cap:
            return int(cap)
    except Exception:
        pass
    return 64 * 1024 * 1024  # v7x per-TC VMEM (smallest of the supported gens)


def _layer_norm(h, gamma, beta, mask, inv_count):
    # h: [tile, C_p] f32, padded lanes are exactly zero.  Two-pass (torch-style)
    # biased variance; `mask` (1 on real lanes, 0 on padding) keeps the padded
    # lanes out of the centered statistics.  gamma/beta are zero-padded, so the
    # padded lanes of the result are exactly zero again.
    mean = jnp.sum(h, axis=-1, keepdims=True) * inv_count
    c = (h - mean) * mask
    var = jnp.sum(c * c, axis=-1, keepdims=True) * inv_count
    inv = jax.lax.rsqrt(var + LN_EPS)  # EUP
    return c * (inv * gamma) + beta


def fc_residual_kernel(x_ref, w1s_ref, w2_ref, vec_ref, o_ref,
                       *, c_out_p, inv_count):
    # x arrives either pre-cast bf16 (padded path) or in its original dtype;
    # the in-kernel cast is free under the MXU and avoids an extra HBM pass.
    x = x_ref[...].astype(jnp.bfloat16)

    # Fused lin1 + shortcut: one MXU push, bf16 in / f32 accumulation.
    t = jnp.dot(x, w1s_ref[...], preferred_element_type=jnp.float32)

    # Stacked per-feature vectors: [b1, bs, g1, be1, b2, g2, be2, mask].
    b1 = vec_ref[0:1]
    bs = vec_ref[1:2]
    g1 = vec_ref[2:3]
    be1 = vec_ref[3:4]
    b2 = vec_ref[4:5]
    g2 = vec_ref[5:6]
    be2 = vec_ref[6:7]
    msk = vec_ref[7:8]

    sc = t[:, c_out_p:] + bs          # shortcut projection (f32)
    h = t[:, :c_out_p] + b1           # lin1 output (f32)

    # norm1 + relu  (Dropout(p=0.0) is the identity)
    h = _layer_norm(h, g1, be1, msk, inv_count)
    h = jnp.maximum(h, 0.0)
    # TODO(synk): a p>0 training-mode dropout would use pltpu.prng_seed /
    # pltpu.prng_random_bits to build a keep-mask here.

    # lin2 (bf16 in / f32 acc)
    h = jnp.dot(h.astype(jnp.bfloat16), w2_ref[...],
                preferred_element_type=jnp.float32) + b2

    # norm2 + relu
    h = _layer_norm(h, g2, be2, msk, inv_count)
    h = jnp.maximum(h, 0.0)

    o_ref[...] = (h + sc).astype(o_ref.dtype)


def fc_residual_block(x, params, *, tile_n=None, out_dtype=None):
    """x: [N, C_in] float32. params: dict from init_params (f32 weights)."""
    N, C_in = x.shape
    C_out = params["w1"].shape[1]
    if out_dtype is None:
        out_dtype = x.dtype  # pass jnp.bfloat16 to halve output writeback

    C_in_p = _round_up(C_in, LANE)
    C_out_p = _round_up(C_out, LANE)

    if tile_n is None:
        # Divisor-aware row tile: <= 512 rows, >= 2 tiles whenever N allows
        # (DMA/compute overlap + v7x 2-TC sharding), minimal last-tile padding.
        n_tiles = max(1, _cdiv(N, 512))
        if N >= 2 * SUBLANE:
            n_tiles = max(n_tiles, 2)
        tile_n = _round_up(_cdiv(N, n_tiles), SUBLANE)
    N_p = _round_up(N, tile_n)
    grid = (N_p // tile_n,)

    bf, f32 = jnp.bfloat16, jnp.float32

    # x: only pre-pad (and pre-cast) when padding is unavoidable; otherwise
    # feed it untouched and cast inside the kernel.
    if (N_p != N) or (C_in_p != C_in):
        xp = _pad2(x, N_p, C_in_p, bf)
    else:
        xp = x

    # lin1 + shortcut fused into one [C_in_p, 2*C_out_p] bf16 weight.
    w1s = jnp.concatenate(
        [_pad2(params["w1"], C_in_p, C_out_p, bf),
         _pad2(params["ws"], C_in_p, C_out_p, bf)], axis=1)
    w2 = _pad2(params["w2"], C_out_p, C_out_p, bf)

    # All per-feature vectors stacked into a single [8, C_out_p] f32 operand
    # (one DMA descriptor, exactly one sublane tile).
    lane_mask = jnp.ones((1, C_out), f32)
    vecs = jnp.concatenate(
        [_pad2(v, 1, C_out_p, f32) for v in
         (params["b1"], params["bs"], params["g1"], params["be1"],
          params["b2"], params["g2"], params["be2"], lane_mask)], axis=0)

    # Row-tiled operands use the default double-buffered pipeline.
    # TODO(synk): raise to pl.Buffered(3) on the x spec if profiling shows the
    # x-tile DMA exposed for small-C / large-N shapes.
    x_spec = pl.BlockSpec((tile_n, C_in_p), lambda i: (i, 0))
    out_spec = pl.BlockSpec((tile_n, C_out_p), lambda i: (i, 0))

    # Grid-invariant operands: constant index_map -> single-buffer them
    # (double-buffering would only double resident VMEM, no overlap win).
    has_buffered = hasattr(pl, "Buffered")

    def resident(shape):
        if has_buffered:
            return pl.BlockSpec(shape, lambda i: (0, 0),
                                pipeline_mode=pl.Buffered(1))
        return pl.BlockSpec(shape, lambda i: (0, 0))

    kernel = functools.partial(fc_residual_kernel,
                               c_out_p=C_out_p, inv_count=1.0 / C_out)

    # Advisory cost estimate for XLA scheduling.
    out_itemsize = jnp.dtype(out_dtype).itemsize
    flops = 2 * N_p * (C_in_p * 2 * C_out_p + C_out_p * C_out_p)
    bytes_accessed = (xp.size * jnp.dtype(xp.dtype).itemsize
                      + (w1s.size + w2.size) * 2
                      + vecs.size * 4
                      + N_p * C_out_p * out_itemsize)
    cost = pl.CostEstimate(flops=flops, transcendentals=2 * N_p,
                           bytes_accessed=bytes_accessed)

    # Accurate resident-VMEM estimate for the chosen buffering scheme, capped
    # at the actual chip capacity with headroom (v5e/v6e 128 MiB, v7x 64 MiB).
    weight_buf = 1 if has_buffered else 2
    est_vmem = (2 * tile_n * C_in_p * jnp.dtype(xp.dtype).itemsize   # x tiles
                + 2 * tile_n * C_out_p * out_itemsize                # out tiles
                + weight_buf * (w1s.size + w2.size) * 2              # bf16 weights
                + weight_buf * vecs.size * 4)                        # f32 vectors
    vmem_cap = _vmem_capacity_bytes()
    vmem_limit = int(min(max(2 * est_vmem, 32 * 1024 * 1024),
                         int(0.85 * vmem_cap)))
    # TODO(synk): once (w1s + w2) exceeds ~1/3 of vmem_cap (C_out beyond a few
    # thousand), switch to a weight-tiled variant (grid axis over C_out column
    # blocks with a pl.when-guarded accumulator) instead of resident weights.

    out_p = pl.pallas_call(
        kernel,
        out_shape=jax.ShapeDtypeStruct((N_p, C_out_p), out_dtype),
        grid_spec=pltpu.PrefetchScalarGridSpec(
            num_scalar_prefetch=0,
            grid=grid,
            in_specs=[
                x_spec,                                  # x tile
                resident((C_in_p, 2 * C_out_p)),         # [w1 | ws]  (bf16)
                resident((C_out_p, C_out_p)),            # w2         (bf16)
                resident((8, C_out_p)),                  # stacked vectors (f32)
            ],
            out_specs=out_spec,
        ),
        compiler_params=pltpu.CompilerParams(
            dimension_semantics=("parallel",),
            vmem_limit_bytes=vmem_limit),
        cost_estimate=cost,
    )(xp, w1s, w2, vecs)

    return out_p[:N, :C_out]


def init_params(key, c_in, c_out):
    """Deterministic init matching torch.nn.Linear's U(-1/sqrt(fan_in), ...)."""
    ks = jax.random.split(key, 6)

    def linear(kw, kb, fan_in, fan_out):
        bound = 1.0 / jnp.sqrt(fan_in)
        w = jax.random.uniform(kw, (fan_in, fan_out), jnp.float32, -bound, bound)
        b = jax.random.uniform(kb, (1, fan_out), jnp.float32, -bound, bound)
        return w, b

    w1, b1 = linear(ks[0], ks[1], c_in, c_out)
    w2, b2 = linear(ks[2], ks[3], c_out, c_out)
    ws, bs = linear(ks[4], ks[5], c_in, c_out)
    ones = jnp.ones((1, c_out), jnp.float32)
    zeros = jnp.zeros((1, c_out), jnp.float32)
    return dict(w1=w1, b1=b1, g1=ones, be1=zeros,
                w2=w2, b2=b2, g2=ones, be2=zeros,
                ws=ws, bs=bs)


def _ln_ref(v, g, b):
    m = jnp.mean(v, -1, keepdims=True)
    c = v - m
    var = jnp.mean(c * c, -1, keepdims=True)
    return c * jax.lax.rsqrt(var + LN_EPS) * g + b


def reference_mixed(x, p):
    """Reference with the same precision policy as the kernel
    (bf16 matmul operands, f32 accumulation / LN)."""
    bf = jnp.bfloat16
    xb = x.astype(bf)
    out = jnp.dot(xb, p["w1"].astype(bf),
                  preferred_element_type=jnp.float32) + p["b1"]
    out = jnp.maximum(_ln_ref(out, p["g1"], p["be1"]), 0.0)
    out = jnp.dot(out.astype(bf), p["w2"].astype(bf),
                  preferred_element_type=jnp.float32) + p["b2"]
    out = jnp.maximum(_ln_ref(out, p["g2"], p["be2"]), 0.0)
    sc = jnp.dot(xb, p["ws"].astype(bf),
                 preferred_element_type=jnp.float32) + p["bs"]
    return out + sc


def reference_f32(x, p):
    out = x @ p["w1"] + p["b1"]
    out = jnp.maximum(_ln_ref(out, p["g1"], p["be1"]), 0.0)
    out = out @ p["w2"] + p["b2"]
    out = jnp.maximum(_ln_ref(out, p["g2"], p["be2"]), 0.0)
    return out + (x @ p["ws"] + p["bs"])


if __name__ == "__main__":
    key = jax.random.PRNGKey(0)
    k_x, k_p = jax.random.split(key)

    N, C_in, C_out = 8, 16, 32
    x = jax.random.normal(k_x, (N, C_in), jnp.float32)
    params = init_params(k_p, C_in, C_out)

    out = jax.block_until_ready(fc_residual_block(x, params))
    assert out.shape == (N, C_out)
    assert out.dtype == jnp.float32

    # Exact-policy check (bf16 matmuls, f32 accumulation / LN).
    ref = reference_mixed(x, params)
    err = float(jnp.max(jnp.abs(out - ref)))
    assert err < 2e-4, f"max err vs mixed-precision ref: {err}"

    # Loose sanity check against the pure-f32 math of the original module.
    ref32 = reference_f32(x, params)
    err32 = float(jnp.max(jnp.abs(out - ref32)))
    assert err32 < 1e-1, f"max err vs f32 ref: {err32}"

    print("KERNEL_OK")
</pallas_src>

<mosaic_0001>
module attributes {stable_mosaic.version = 11 : i64} {
  func.func @fc_residual_kernel(%arg0: i32, %arg1: memref<8x128xbf16, #tpu.memory_space<vmem>>, %arg2: memref<128x256xbf16, #tpu.memory_space<vmem>>, %arg3: memref<128x128xbf16, #tpu.memory_space<vmem>>, %arg4: memref<8x128xf32, #tpu.memory_space<vmem>>, %arg5: memref<8x128xf32, #tpu.memory_space<vmem>>) attributes {dimension_semantics = [#tpu.dimension_semantics<parallel>], iteration_bounds = array<i64: 1>, scalar_prefetch = 0 : i64, scratch_operands = 0 : i64, tpu.core_type = #tpu.core_type<tc>, window_params = [{transform_indices = @transform_0, window_bounds = array<i64: 8, 128>}, {pipeline_mode = #tpu.pipeline_mode<synchronous>, transform_indices = @transform_1, window_bounds = array<i64: 128, 256>}, {pipeline_mode = #tpu.pipeline_mode<synchronous>, transform_indices = @transform_2, window_bounds = array<i64: 128, 128>}, {pipeline_mode = #tpu.pipeline_mode<synchronous>, transform_indices = @transform_3, window_bounds = array<i64: 8, 128>}, {transform_indices = @transform_4, window_bounds = array<i64: 8, 128>}]} {
    %c0 = arith.constant 0 : index
    %c0_0 = arith.constant 0 : index
    %0 = vector.load %arg1[%c0, %c0_0] : memref<8x128xbf16, #tpu.memory_space<vmem>>, vector<8x128xbf16>
    %c0_1 = arith.constant 0 : index
    %c0_2 = arith.constant 0 : index
    %1 = vector.load %arg2[%c0_1, %c0_2] : memref<128x256xbf16, #tpu.memory_space<vmem>>, vector<128x256xbf16>
    %cst = arith.constant dense<0.000000e+00> : vector<8x256xf32>
    %2 = tpu.matmul %0, %1, %cst {dimension_numbers = #tpu.dot_dimension_numbers<[1], [0], [0], [1], [0, 0, 1, 1], [], []>} : vector<8x128xbf16>, vector<128x256xbf16>, vector<8x256xf32> -> vector<8x256xf32>
    %c0_3 = arith.constant 0 : index
    %c0_4 = arith.constant 0 : index
    %3 = vector.load %arg4[%c0_3, %c0_4] : memref<8x128xf32, #tpu.memory_space<vmem>>, vector<1x128xf32>
    %c1 = arith.constant 1 : index
    %c0_5 = arith.constant 0 : index
    %4 = vector.load %arg4[%c1, %c0_5] : memref<8x128xf32, #tpu.memory_space<vmem>>, vector<1x128xf32>
    %c2 = arith.constant 2 : index
    %c0_6 = arith.constant 0 : index
    %5 = vector.load %arg4[%c2, %c0_6] : memref<8x128xf32, #tpu.memory_space<vmem>>, vector<1x128xf32>
    %c3 = arith.constant 3 : index
    %c0_7 = arith.constant 0 : index
    %6 = vector.load %arg4[%c3, %c0_7] : memref<8x128xf32, #tpu.memory_space<vmem>>, vector<1x128xf32>
    %c4 = arith.constant 4 : index
    %c0_8 = arith.constant 0 : index
    %7 = vector.load %arg4[%c4, %c0_8] : memref<8x128xf32, #tpu.memory_space<vmem>>, vector<1x128xf32>
    %c5 = arith.constant 5 : index
    %c0_9 = arith.constant 0 : index
    %8 = vector.load %arg4[%c5, %c0_9] : memref<8x128xf32, #tpu.memory_space<vmem>>, vector<1x128xf32>
    %c6 = arith.constant 6 : index
    %c0_10 = arith.constant 0 : index
    %9 = vector.load %arg4[%c6, %c0_10] : memref<8x128xf32, #tpu.memory_space<vmem>>, vector<1x128xf32>
    %c7 = arith.constant 7 : index
    %c0_11 = arith.constant 0 : index
    %10 = vector.load %arg4[%c7, %c0_11] : memref<8x128xf32, #tpu.memory_space<vmem>>, vector<1x128xf32>
    %11 = vector.extract_strided_slice %2 {offsets = [0, 128], sizes = [8, 128], strides = [1, 1]} : vector<8x256xf32> to vector<8x128xf32>
    %12 = vector.broadcast %4 : vector<1x128xf32> to vector<8x128xf32>
    %13 = arith.addf %11, %12 : vector<8x128xf32>
    %14 = vector.extract_strided_slice %2 {offsets = [0, 0], sizes = [8, 128], strides = [1, 1]} : vector<8x256xf32> to vector<8x128xf32>
    %15 = vector.broadcast %3 : vector<1x128xf32> to vector<8x128xf32>
    %16 = arith.addf %14, %15 : vector<8x128xf32>
    %cst_12 = arith.constant dense<0.000000e+00> : vector<8xf32>
    %17 = vector.multi_reduction <add>, %16, %cst_12 [1] : vector<8x128xf32> to vector<8xf32>
    %18 = vector.shape_cast %17 : vector<8xf32> to vector<8x1xf32>
    %cst_13 = arith.constant 3.125000e-02 : f32
    %19 = vector.broadcast %cst_13 : f32 to vector<8x1xf32>
    %20 = arith.mulf %18, %19 : vector<8x1xf32>
    %21 = vector.broadcast %20 : vector<8x1xf32> to vector<8x128xf32>
    %22 = arith.subf %16, %21 : vector<8x128xf32>
    %23 = vector.broadcast %10 : vector<1x128xf32> to vector<8x128xf32>
    %24 = arith.mulf %22, %23 : vector<8x128xf32>
    %25 = arith.mulf %24, %24 : vector<8x128xf32>
    %cst_14 = arith.constant dense<0.000000e+00> : vector<8xf32>
    %26 = vector.multi_reduction <add>, %25, %cst_14 [1] : vector<8x128xf32> to vector<8xf32>
    %27 = vector.shape_cast %26 : vector<8xf32> to vector<8x1xf32>
    %cst_15 = arith.constant 3.125000e-02 : f32
    %28 = vector.broadcast %cst_15 : f32 to vector<8x1xf32>
    %29 = arith.mulf %27, %28 : vector<8x1xf32>
    %cst_16 = arith.constant 9.99999974E-6 : f32
    %30 = vector.broadcast %cst_16 : f32 to vector<8x1xf32>
    %31 = arith.addf %29, %30 : vector<8x1xf32>
    %32 = math.rsqrt %31 : vector<8x1xf32>
    %33 = vector.broadcast %32 : vector<8x1xf32> to vector<8x128xf32>
    %34 = vector.broadcast %5 : vector<1x128xf32> to vector<8x128xf32>
    %35 = arith.mulf %33, %34 : vector<8x128xf32>
    %36 = arith.mulf %24, %35 : vector<8x128xf32>
    %37 = vector.broadcast %6 : vector<1x128xf32> to vector<8x128xf32>
    %38 = arith.addf %36, %37 : vector<8x128xf32>
    %cst_17 = arith.constant 0.000000e+00 : f32
    %39 = vector.broadcast %cst_17 : f32 to vector<8x128xf32>
    %40 = arith.maximumf %38, %39 : vector<8x128xf32>
    %41 = arith.truncf %40 : vector<8x128xf32> to vector<8x128xbf16>
    %c0_18 = arith.constant 0 : index
    %c0_19 = arith.constant 0 : index
    %42 = vector.load %arg3[%c0_18, %c0_19] : memref<128x128xbf16, #tpu.memory_space<vmem>>, vector<128x128xbf16>
    %cst_20 = arith.constant dense<0.000000e+00> : vector<8x128xf32>
    %43 = tpu.matmul %41, %42, %cst_20 {dimension_numbers = #tpu.dot_dimension_numbers<[1], [0], [0], [1], [0, 0, 1, 1], [], []>} : vector<8x128xbf16>, vector<128x128xbf16>, vector<8x128xf32> -> vector<8x128xf32>
    %44 = vector.broadcast %7 : vector<1x128xf32> to vector<8x128xf32>
    %45 = arith.addf %43, %44 : vector<8x128xf32>
    %cst_21 = arith.constant dense<0.000000e+00> : vector<8xf32>
    %46 = vector.multi_reduction <add>, %45, %cst_21 [1] : vector<8x128xf32> to vector<8xf32>
    %47 = vector.shape_cast %46 : vector<8xf32> to vector<8x1xf32>
    %cst_22 = arith.constant 3.125000e-02 : f32
    %48 = vector.broadcast %cst_22 : f32 to vector<8x1xf32>
    %49 = arith.mulf %47, %48 : vector<8x1xf32>
    %50 = vector.broadcast %49 : vector<8x1xf32> to vector<8x128xf32>
    %51 = arith.subf %45, %50 : vector<8x128xf32>
    %52 = vector.broadcast %10 : vector<1x128xf32> to vector<8x128xf32>
    %53 = arith.mulf %51, %52 : vector<8x128xf32>
    %54 = arith.mulf %53, %53 : vector<8x128xf32>
    %cst_23 = arith.constant dense<0.000000e+00> : vector<8xf32>
    %55 = vector.multi_reduction <add>, %54, %cst_23 [1] : vector<8x128xf32> to vector<8xf32>
    %56 = vector.shape_cast %55 : vector<8xf32> to vector<8x1xf32>
    %cst_24 = arith.constant 3.125000e-02 : f32
    %57 = vector.broadcast %cst_24 : f32 to vector<8x1xf32>
    %58 = arith.mulf %56, %57 : vector<8x1xf32>
    %cst_25 = arith.constant 9.99999974E-6 : f32
    %59 = vector.broadcast %cst_25 : f32 to vector<8x1xf32>
    %60 = arith.addf %58, %59 : vector<8x1xf32>
    %61 = math.rsqrt %60 : vector<8x1xf32>
    %62 = vector.broadcast %61 : vector<8x1xf32> to vector<8x128xf32>
    %63 = vector.broadcast %8 : vector<1x128xf32> to vector<8x128xf32>
    %64 = arith.mulf %62, %63 : vector<8x128xf32>
    %65 = arith.mulf %53, %64 : vector<8x128xf32>
    %66 = vector.broadcast %9 : vector<1x128xf32> to vector<8x128xf32>
    %67 = arith.addf %65, %66 : vector<8x128xf32>
    %cst_26 = arith.constant 0.000000e+00 : f32
    %68 = vector.broadcast %cst_26 : f32 to vector<8x128xf32>
    %69 = arith.maximumf %67, %68 : vector<8x128xf32>
    %70 = arith.addf %69, %13 : vector<8x128xf32>
    %c0_27 = arith.constant 0 : index
    %c0_28 = arith.constant 0 : index
    %71 = vector.load %arg5[%c0_27, %c0_28] : memref<8x128xf32, #tpu.memory_space<vmem>>, vector<8x128xf32>
    tpu.vector_store %arg5[%c0_27, %c0_28], %70 {strides = array<i32>} : memref<8x128xf32, #tpu.memory_space<vmem>>, vector<8x128xf32>,
    return
  }
  func.func @transform_0(%arg0: i32) -> (i32, i32) {
    %c0_i32 = arith.constant 0 : i32
    %c0_i32_0 = arith.constant 0 : i32
    return %arg0, %c0_i32 : i32, i32
  }
  func.func @transform_1(%arg0: i32) -> (i32, i32) {
    %c0_i32 = arith.constant 0 : i32
    %c0_i32_0 = arith.constant 0 : i32
    %c0_i32_1 = arith.constant 0 : i32
    return %c0_i32, %c0_i32_0 : i32, i32
  }
  func.func @transform_2(%arg0: i32) -> (i32, i32) {
    %c0_i32 = arith.constant 0 : i32
    %c0_i32_0 = arith.constant 0 : i32
    %c0_i32_1 = arith.constant 0 : i32
    return %c0_i32, %c0_i32_0 : i32, i32
  }
  func.func @transform_3(%arg0: i32) -> (i32, i32) {
    %c0_i32 = arith.constant 0 : i32
    %c0_i32_0 = arith.constant 0 : i32
    %c0_i32_1 = arith.constant 0 : i32
    return %c0_i32, %c0_i32_0 : i32, i32
  }
  func.func @transform_4(%arg0: i32) -> (i32, i32) {
    %c0_i32 = arith.constant 0 : i32
    %c0_i32_0 = arith.constant 0 : i32
    return %arg0, %c0_i32 : i32, i32
  }
}

</mosaic_0001>

<llo_original>
// kernel: tpu_custom_call.1
$region0: #{tpu_custom_call.1}
  #allocation0 [shape = 'u32[]', space=smem, size = 0x4, offset = 0x4, fixed_abs, tag = 'smem constant byte address 0x4 - core index']
  #allocation1 [shape = 'u32[144,128]{1,0:T(1,128)}', space=vmem, size = 0x12000, scoped, tag = 'internal scratch']
  %s0 = inlined_call_operand.hbm [shape: bf16[8,128], index: 0, kind: input, shape index: {}]
  %s1 = inlined_call_operand.hbm [shape: bf16[128,256], index: 1, kind: input, shape index: {}]
  %s2 = inlined_call_operand.hbm [shape: bf16[128,128], index: 2, kind: input, shape index: {}]
  %s3 = inlined_call_operand.hbm [shape: f32[8,128], index: 3, kind: input, shape index: {}]
  %s4 = inlined_call_operand.hbm [shape: f32[8,128], index: 4, kind: output, shape index: {}]
  %s5 = sld [smem:[#allocation0]]
  $region42: #{tpu_custom_call.1} parent=0
    _
  %s7 = ssub.s32 1, %s5
  %s8 = scalar_select 0, %s7, %s5
  $region1: #{tpu_custom_call.1} parent=0
    #allocation2 [shape = 'u8[2048]{0}', space=vmem, size = 0x800, scoped, tag = 'input window, operand 0, single buffered']
    #allocation3 [shape = 's32[1]{0}', space=sflag, size = 0x4, scoped, tag = 'scoped memory for tpu_custom_call.1']
    #allocation4 [shape = 's32[1]{0}', space=sflag, size = 0x4, scoped, tag = 'scoped memory for tpu_custom_call.1']
    #allocation5 [shape = 'u8[65536]{0}', space=vmem, size = 0x10000, scoped, tag = 'input window, operand 1, single buffered']
    #allocation6 [shape = 's32[1]{0}', space=sflag, size = 0x4, scoped, tag = 'scoped memory for tpu_custom_call.1']
    #allocation7 [shape = 'u8[32768]{0}', space=vmem, size = 0x8000, scoped, tag = 'input window, operand 2, single buffered']
    #allocation8 [shape = 'u8[4096]{0}', space=vmem, size = 0x1000, scoped, tag = 'input window, operand 3, single buffered']
    #allocation9 [shape = 's32[1]{0}', space=sflag, size = 0x4, scoped, tag = 'scoped memory for tpu_custom_call.1']
    #allocation10 [shape = 'u8[4096]{0}', space=vmem, size = 0x1000, scoped, tag = 'output window, operand 0, single buffered']
    %9 = vsyncpa [#allocation3], 0
    %10 = vsyncpa [#allocation6], 0
    %11 = vsyncpa [#allocation9], 0
    %12 = vsyncpa [#allocation4], 0
    // Predicated region
    $region2: #{tpu_custom_call.1} parent=1 // pred_check
      _
    $region3: #{tpu_custom_call.1} parent=1 // pred_check_branch
      %14 = sbr.rel (0) target = $region5
    $region4: #{tpu_custom_call.1} parent=1 // pred_region
      %s16 = ssub.s32 64, 64
      %17 = vsyncadd [#allocation3], %s16
      %s19 = sshll.u32 [#allocation2], 4
      %s20 = int_to_ptr.vmem [resolvable:$true] %s19
      %22 = dma.hbm_to_vmem [thread:$0]  %s0, 64, %s20, [#allocation3]
    $region5: #{tpu_custom_call.1} parent=1 // pred_fallthru
      _
    // Predicated region
    $region6: #{tpu_custom_call.1} parent=1 // pred_check
      _
    $region7: #{tpu_custom_call.1} parent=1 // pred_check_branch
      %24 = sbr.rel (0) target = $region9
    $region8: #{tpu_custom_call.1} parent=1 // pred_region
      %s26 = ssub.s32 2048, 2048
      %27 = vsyncadd [#allocation6], %s26
      %s28 = sshll.u32 [#allocation5], 4
      %s29 = int_to_ptr.vmem [resolvable:$true] %s28
      %34 = dma.hbm_to_vmem [thread:$0]  %s1, 2048, %s29, [#allocation6], 128, 128, 8
    $region9: #{tpu_custom_call.1} parent=1 // pred_fallthru
      _
    // Predicated region
    $region10: #{tpu_custom_call.1} parent=1 // pred_check
      _
    $region11: #{tpu_custom_call.1} parent=1 // pred_check_branch
      %36 = sbr.rel (0) target = $region13
    $region12: #{tpu_custom_call.1} parent=1 // pred_region
      %s38 = ssub.s32 1024, 1024
      %39 = vsyncadd [#allocation6], %s38
      %s40 = sshll.u32 [#allocation7], 4
      %s41 = int_to_ptr.vmem [resolvable:$true] %s40
      %46 = dma.hbm_to_vmem [thread:$0]  %s2, 1024, %s41, [#allocation6], 64, 64, 4
    $region13: #{tpu_custom_call.1} parent=1 // pred_fallthru
      _
    // Predicated region
    $region14: #{tpu_custom_call.1} parent=1 // pred_check
      _
    $region15: #{tpu_custom_call.1} parent=1 // pred_check_branch
      %48 = sbr.rel (0) target = $region17
    $region16: #{tpu_custom_call.1} parent=1 // pred_region
      %s50 = ssub.s32 128, 128
      %51 = vsyncadd [#allocation9], %s50
      %s53 = sshll.u32 [#allocation8], 4
      %s54 = int_to_ptr.vmem [resolvable:$true] %s53
      %56 = dma.hbm_to_vmem [thread:$0]  %s3, 128, %s54, [#allocation9]
    $region17: #{tpu_custom_call.1} parent=1 // pred_fallthru
      _
    // Predicated region
    $region18: #{tpu_custom_call.1} parent=1 // pred_check
      _
    $region19: #{tpu_custom_call.1} parent=1 // pred_check_branch
      %58 = sbr.rel (0) target = $region21
    $region20: #{tpu_custom_call.1} parent=1 // pred_region
      %59 = dma.done [#allocation3], 64
    $region21: #{tpu_custom_call.1} parent=1 // pred_fallthru
      _
    // Predicated region
    $region22: #{tpu_custom_call.1} parent=1 // pred_check
      _
    $region23: #{tpu_custom_call.1} parent=1 // pred_check_branch
      %61 = sbr.rel (0) target = $region25
    $region24: #{tpu_custom_call.1} parent=1 // pred_region
      %62 = dma.done [#allocation6], 2048
    $region25: #{tpu_custom_call.1} parent=1 // pred_fallthru
      _
    // Predicated region
    $region26: #{tpu_custom_call.1} parent=1 // pred_check
      _
    $region27: #{tpu_custom_call.1} parent=1 // pred_check_branch
      %64 = sbr.rel (0) target = $region29
    $region28: #{tpu_custom_call.1} parent=1 // pred_region
      %65 = dma.done [#allocation6], 1024
    $region29: #{tpu_custom_call.1} parent=1 // pred_fallthru
      _
    // Predicated region
    $region30: #{tpu_custom_call.1} parent=1 // pred_check
      _
    $region31: #{tpu_custom_call.1} parent=1 // pred_check_branch
      %67 = sbr.rel (0) target = $region33
    $region32: #{tpu_custom_call.1} parent=1 // pred_region
      %68 = dma.done [#allocation9], 128
    $region33: #{tpu_custom_call.1} parent=1 // pred_fallthru
      _
    %v70 = vld [vmem:[#allocation2] sm:$0xf]
    %v71 = vld [vmem:[#allocation5] sm:$0xff]
    %v72 = vld [vmem:[#allocation5 + $0x8] sm:$0xff]
    %v73 = vld [vmem:[#allocation5 + $0x10] sm:$0xff]
    %v74 = vld [vmem:[#allocation5 + $0x18] sm:$0xff]
    %v75 = vld [vmem:[#allocation5 + $0x20] sm:$0xff]
    %v76 = vld [vmem:[#allocation5 + $0x28] sm:$0xff]
    %v77 = vld [vmem:[#allocation5 + $0x30] sm:$0xff]
    %v78 = vld [vmem:[#allocation5 + $0x38] sm:$0xff]
    %v79 = vld [vmem:[#allocation5 + $0x40] sm:$0xff]
    %v80 = vld [vmem:[#allocation5 + $0x48] sm:$0xff]
    %v81 = vld [vmem:[#allocation5 + $0x50] sm:$0xff]
    %v82 = vld [vmem:[#allocation5 + $0x58] sm:$0xff]
    %v83 = vld [vmem:[#allocation5 + $0x60] sm:$0xff]
    %v84 = vld [vmem:[#allocation5 + $0x68] sm:$0xff]
    %v85 = vld [vmem:[#allocation5 + $0x70] sm:$0xff]
    %v86 = vld [vmem:[#allocation5 + $0x78] sm:$0xff]
    %v103 = vunpack.c.l.b16 %v71
    %v104 = vunpack.c.h.b16 %v71
    %v105 = vunpack.c.l.b16 %v72
    %v106 = vunpack.c.h.b16 %v72
    %v107 = vunpack.c.l.b16 %v73
    %v108 = vunpack.c.h.b16 %v73
    %v109 = vunpack.c.l.b16 %v74
    %v110 = vunpack.c.h.b16 %v74
    %v111 = vunpack.c.l.b16 %v75
    %v112 = vunpack.c.h.b16 %v75
    %v113 = vunpack.c.l.b16 %v76
    %v114 = vunpack.c.h.b16 %v76
    %v115 = vunpack.c.l.b16 %v77
    %v116 = vunpack.c.h.b16 %v77
    %v117 = vunpack.c.l.b16 %v78
    %v118 = vunpack.c.h.b16 %v78
    %v119 = vunpack.c.l.b16 %v79
    %v120 = vunpack.c.h.b16 %v79
    %v121 = vunpack.c.l.b16 %v80
    %v122 = vunpack.c.h.b16 %v80
    %v123 = vunpack.c.l.b16 %v81
    %v124 = vunpack.c.h.b16 %v81
    %v125 = vunpack.c.l.b16 %v82
    %v126 = vunpack.c.h.b16 %v82
    %v127 = vunpack.c.l.b16 %v83
    %v128 = vunpack.c.h.b16 %v83
    %v129 = vunpack.c.l.b16 %v84
    %v130 = vunpack.c.h.b16 %v84
    %v131 = vunpack.c.l.b16 %v85
    %v132 = vunpack.c.h.b16 %v85
    %v133 = vunpack.c.l.b16 %v86
    %v134 = vunpack.c.h.b16 %v86
    %v135 = vpack.c.b16 %v105, %v103
    %v136 = vpack.c.b16 %v106, %v104
    %v137 = vpack.c.b16 %v109, %v107
    %v138 = vpack.c.b16 %v110, %v108
    %v139 = vpack.c.b16 %v113, %v111
    %v140 = vpack.c.b16 %v114, %v112
    %v141 = vpack.c.b16 %v117, %v115
    %v142 = vpack.c.b16 %v118, %v116
    %v143 = vpack.c.b16 %v121, %v119
    %v144 = vpack.c.b16 %v122, %v120
    %v145 = vpack.c.b16 %v125, %v123
    %v146 = vpack.c.b16 %v126, %v124
    %v147 = vpack.c.b16 %v129, %v127
    %v148 = vpack.c.b16 %v130, %v128
    %v149 = vpack.c.b16 %v133, %v131
    %v150 = vpack.c.b16 %v134, %v132
    %167 = vmatprep.subr.bf16.mxu0 %v150
    %168 = vmatpush1.bf16.msra.mxu0 %v149
    %169 = vmatprep.subr.bf16.mxu0 %v148
    %170 = vmatpush1.bf16.msra.mxu0 %v147
    %171 = vmatprep.subr.bf16.mxu0 %v146
    %172 = vmatpush1.bf16.msra.mxu0 %v145
    %173 = vmatprep.subr.bf16.mxu0 %v144
    %174 = vmatpush1.bf16.msra.mxu0 %v143
    %175 = vmatprep.subr.bf16.mxu0 %v142
    %176 = vmatpush1.bf16.msra.mxu0 %v141
    %177 = vmatprep.subr.bf16.mxu0 %v140
    %178 = vmatpush1.bf16.msra.mxu0 %v139
    %179 = vmatprep.subr.bf16.mxu0 %v138
    %180 = vmatpush1.bf16.msra.mxu0 %v137
    %181 = vmatprep.subr.bf16.mxu0 %v136
    %182 = vmatpush1.bf16.msra.mxu0 %v135
    %183 = vmatprep.subr.bf16.mxu0 0
    %184 = vmatpush2.bf16.msra.mxu0 0
    %185 = vmatprep.subr.bf16.mxu0 0
    %186 = vmatpush2.bf16.msra.mxu0 0
    %187 = vmatprep.subr.bf16.mxu0 0
    %188 = vmatpush2.bf16.msra.mxu0 0
    %189 = vmatprep.subr.bf16.mxu0 0
    %190 = vmatpush2.bf16.msra.mxu0 0
    %191 = vmatprep.subr.bf16.mxu0 0
    %192 = vmatpush2.bf16.msra.mxu0 0
    %193 = vmatprep.subr.bf16.mxu0 0
    %194 = vmatpush2.bf16.msra.mxu0 0
    %195 = vmatprep.subr.bf16.mxu0 0
    %196 = vmatpush2.bf16.msra.mxu0 0
    %197 = vmatprep.subr.bf16.mxu0 0
    %198 = vmatpush2.bf16.msra.mxu0 0
    %199 = vmatprep.mubr.bf16.mxu0 0
    %200 = vmatmul.mubr.bf16.gmra.mxu0 %v70
    %v201 = vpop.f32.mrf.mxu0
    %v202 = vadd.f32 0.0, %v201
    %v203 = vpop.f32.mrf.mxu0
    %v204 = vadd.f32 0.0, %v203
    %v205 = vpop.f32.mrf.mxu0
    %v206 = vpop.f32.mrf.mxu0
    %207 = vdwg.mxu0
    %v208 = vld [vmem:[#allocation8] sm:$0x1]
    %v209 = vld [vmem:[#allocation8 + $0x1] sm:$0x1]
    %v210 = vld [vmem:[#allocation8 + $0x2] sm:$0x1]
    %v211 = vld [vmem:[#allocation8 + $0x3] sm:$0x1]
    %v212 = vld [vmem:[#allocation8 + $0x4] sm:$0x1]
    %v213 = vld [vmem:[#allocation8 + $0x5] sm:$0x1]
    %v214 = vld [vmem:[#allocation8 + $0x6] sm:$0x1]
    %v215 = vld [vmem:[#allocation8 + $0x7] sm:$0x1]
    %v216 = vlaneseq
    %v217 = vshrl.u32 %v216, 7
    %v218 = vsub.s32 0, %v217
    %v219 = vrot.slane %v209, %v218
    %v220 = vadd.f32 %v204, %v219
    %v221 = vlaneseq
    %v222 = vshrl.u32 %v221, 7
    %v223 = vsub.s32 0, %v222
    %v224 = vrot.slane %v208, %v223
    %v225 = vadd.f32 %v202, %v224
    %226 = vadd.xlane.f32.xlu0 %v225
    %v227 = vpop.xlane.xlu0 %226
    %v228 = vmul.f32 %v227, 0.03125
    %v229 = vsub.f32 %v225, %v228
    %v230 = vlaneseq
    %v231 = vshrl.u32 %v230, 7
    %v232 = vsub.s32 0, %v231
    %v233 = vrot.slane %v215, %v232
    %v234 = vmul.f32 %v229, %v233
    %v235 = vmul.f32 %v234, %v234
    %236 = vadd.xlane.f32.xlu0 %v235
    %v237 = vpop.xlane.xlu0 %236
    %v238 = vmul.f32 %v237, 0.03125
    %v239 = vadd.f32 %v238, 1e-05
    %v240 = vrsqrt.pop %v239
    %v241 = vlaneseq
    %v242 = vshrl.u32 %v241, 7
    %v243 = vsub.s32 0, %v242
    %v244 = vrot.slane %v210, %v243
    %v245 = vmul.f32 %v240, %v244
    %v246 = vmul.f32 %v234, %v245
    %v247 = vlaneseq
    %v248 = vshrl.u32 %v247, 7
    %v249 = vsub.s32 0, %v248
    %v250 = vrot.slane %v211, %v249
    %v251 = vadd.f32 %v246, %v250
    %v252 = vmax.f32 %v251, 0.0
    %v253 = vpack.c.bf16 %v252, %v252
    %v254 = vld [vmem:[#allocation7] sm:$0xf]
    %v255 = vld [vmem:[#allocation7 + $0x4] sm:$0xf]
    %v256 = vld [vmem:[#allocation7 + $0x8] sm:$0xf]
    %v257 = vld [vmem:[#allocation7 + $0xc] sm:$0xf]
    %v258 = vld [vmem:[#allocation7 + $0x10] sm:$0xf]
    %v259 = vld [vmem:[#allocation7 + $0x14] sm:$0xf]
    %v260 = vld [vmem:[#allocation7 + $0x18] sm:$0xf]
    %v261 = vld [vmem:[#allocation7 + $0x1c] sm:$0xf]
    %v262 = vld [vmem:[#allocation7 + $0x20] sm:$0xf]
    %v263 = vld [vmem:[#allocation7 + $0x24] sm:$0xf]
    %v264 = vld [vmem:[#allocation7 + $0x28] sm:$0xf]
    %v265 = vld [vmem:[#allocation7 + $0x2c] sm:$0xf]
    %v266 = vld [vmem:[#allocation7 + $0x30] sm:$0xf]
    %v267 = vld [vmem:[#allocation7 + $0x34] sm:$0xf]
    %v268 = vld [vmem:[#allocation7 + $0x38] sm:$0xf]
    %v269 = vld [vmem:[#allocation7 + $0x3c] sm:$0xf]
    %v270 = vlaneseq
    %v271 = vshrl.u32 %v270, 7
    %v272 = vsub.s32 0, %v271
    %v273 = vrot.slane %v212, %v272
    %v290 = vunpack.c.l.b16 %v254
    %v291 = vunpack.c.l.b16 %v255
    %v292 = vunpack.c.l.b16 %v256
    %v293 = vunpack.c.l.b16 %v257
    %v294 = vunpack.c.l.b16 %v258
    %v295 = vunpack.c.l.b16 %v259
    %v296 = vunpack.c.l.b16 %v260
    %v297 = vunpack.c.l.b16 %v261
    %v298 = vunpack.c.l.b16 %v262
    %v299 = vunpack.c.l.b16 %v263
    %v300 = vunpack.c.l.b16 %v264
    %v301 = vunpack.c.l.b16 %v265
    %v302 = vunpack.c.l.b16 %v266
    %v303 = vunpack.c.l.b16 %v267
    %v304 = vunpack.c.l.b16 %v268
    %v305 = vunpack.c.l.b16 %v269
    %v306 = vpack.c.b16 %v291, %v290
    %v307 = vpack.c.b16 %v293, %v292
    %v308 = vpack.c.b16 %v295, %v294
    %v309 = vpack.c.b16 %v297, %v296
    %v310 = vpack.c.b16 %v299, %v298
    %v311 = vpack.c.b16 %v301, %v300
    %v312 = vpack.c.b16 %v303, %v302
    %v313 = vpack.c.b16 %v305, %v304
    %322 = vmatprep.subr.bf16.mxu0 0
    %323 = vmatpush1.bf16.msra.mxu0 %v313
    %324 = vmatprep.subr.bf16.mxu0 0
    %325 = vmatpush1.bf16.msra.mxu0 %v312
    %326 = vmatprep.subr.bf16.mxu0 0
    %327 = vmatpush1.bf16.msra.mxu0 %v311
    %328 = vmatprep.subr.bf16.mxu0 0
    %329 = vmatpush1.bf16.msra.mxu0 %v310
    %330 = vmatprep.subr.bf16.mxu0 0
    %331 = vmatpush1.bf16.msra.mxu0 %v309
    %332 = vmatprep.subr.bf16.mxu0 0
    %333 = vmatpush1.bf16.msra.mxu0 %v308
    %334 = vmatprep.subr.bf16.mxu0 0
    %335 = vmatpush1.bf16.msra.mxu0 %v307
    %336 = vmatprep.subr.bf16.mxu0 0
    %337 = vmatpush1.bf16.msra.mxu0 %v306
    %338 = vmatprep.subr.bf16.mxu0 0
    %339 = vmatpush2.bf16.msra.mxu0 0
    %340 = vmatprep.subr.bf16.mxu0 0
    %341 = vmatpush2.bf16.msra.mxu0 0
    %342 = vmatprep.subr.bf16.mxu0 0
    %343 = vmatpush2.bf16.msra.mxu0 0
    %344 = vmatprep.subr.bf16.mxu0 0
    %345 = vmatpush2.bf16.msra.mxu0 0
    %346 = vmatprep.subr.bf16.mxu0 0
    %347 = vmatpush2.bf16.msra.mxu0 0
    %348 = vmatprep.subr.bf16.mxu0 0
    %349 = vmatpush2.bf16.msra.mxu0 0
    %350 = vmatprep.subr.bf16.mxu0 0
    %351 = vmatpush2.bf16.msra.mxu0 0
    %352 = vmatprep.subr.bf16.mxu0 0
    %353 = vmatpush2.bf16.msra.mxu0 0
    %354 = vmatprep.mubr.bf16.mxu0 0
    %355 = vmatmul.mubr.bf16.gmra.mxu0 %v253
    %v356 = vpop.f32.mrf.mxu0
    %v357 = vadd.f32 %v273, %v356
    %v358 = vpop.f32.mrf.mxu0
    %v359 = vpop.f32.mrf.mxu0
    %v360 = vpop.f32.mrf.mxu0
    %361 = vdwg.mxu0
    %362 = vadd.xlane.f32.xlu0 %v357
    %v363 = vpop.xlane.xlu0 %362
    %v364 = vmul.f32 %v363, 0.03125
    %v365 = vsub.f32 %v357, %v364
    %v366 = vmul.f32 %v365, %v233
    %v367 = vmul.f32 %v366, %v366
    %368 = vadd.xlane.f32.xlu0 %v367
    %v369 = vpop.xlane.xlu0 %368
    %v370 = vmul.f32 %v369, 0.03125
    %v371 = vadd.f32 %v370, 1e-05
    %v372 = vrsqrt.pop %v371
    %v373 = vlaneseq
    %v374 = vshrl.u32 %v373, 7
    %v375 = vsub.s32 0, %v374
    %v376 = vrot.slane %v213, %v375
    %v377 = vmul.f32 %v372, %v376
    %v378 = vmul.f32 %v366, %v377
    %v379 = vlaneseq
    %v380 = vshrl.u32 %v379, 7
    %v381 = vsub.s32 0, %v380
    %v382 = vrot.slane %v214, %v381
    %v383 = vadd.f32 %v378, %v382
    %v384 = vmax.f32 %v383, 0.0
    %v385 = vadd.f32 %v384, %v220
    %386 = vst [vmem:[#allocation10] sm:$0xff] %v385
    // Predicated region
    $region34: #{tpu_custom_call.1} parent=1 // pred_check
      _
    $region35: #{tpu_custom_call.1} parent=1 // pred_check_branch
      %388 = sbr.rel (0) target = $region37
    $region36: #{tpu_custom_call.1} parent=1 // pred_region
      %s390 = ssub.s32 128, 128
      %391 = vsyncadd [#allocation4], %s390
      %s393 = sshll.u32 [#allocation10], 4
      %s394 = int_to_ptr.vmem [resolvable:$true] %s393
      %396 = dma.vmem_to_hbm [thread:$0]  %s394, 128, %s4, [#allocation4]
    $region37: #{tpu_custom_call.1} parent=1 // pred_fallthru
      _
    // Predicated region
    $region38: #{tpu_custom_call.1} parent=1 // pred_check
      _
    $region39: #{tpu_custom_call.1} parent=1 // pred_check_branch
      %398 = sbr.rel (0) target = $region41
    $region40: #{tpu_custom_call.1} parent=1 // pred_region
      %399 = dma.done [#allocation4], 128
    $region41: #{tpu_custom_call.1} parent=1 // pred_fallthru
      _
    %400 = vsyncpa [#allocation3], 1
    %401 = vsyncpa [#allocation6], 1
    %402 = vsyncpa [#allocation9], 1
    %403 = vsyncpa [#allocation4], 1

</llo_original>
